<compile_context>
chip_gen: v6e
topology: v6e:2x2x1
jax: 0.10.0
libtpu: 0.0.40
codegen_flags: <defaults>
</compile_context>

<pallas_src>
import jax
import jax.numpy as jnp
from jax.experimental import pallas as pl
from jax.experimental.pallas import tpu as pltpu


def _conv1x1_bias_add_kernel(x_ref, w_ref, b_ref, other_ref, o_ref):
    # x_ref:     (Cin,  tile_s)   per-batch channel-major slab
    # w_ref:     (Cout, Cin)      resident across the whole grid (constant index_map)
    # b_ref:     (Cout, 1)        resident across the whole grid
    # other_ref: (Cout, tile_s)
    # o_ref:     (Cout, tile_s)
    y = jnp.dot(w_ref[...], x_ref[...], preferred_element_type=jnp.float32)
    o_ref[...] = (y + b_ref[...] + other_ref[...]).astype(o_ref.dtype)


def _pick_spatial_tile(S, max_tile=2048):
    """Largest multiple-of-128 divisor of S that is <= max_tile; else full S."""
    if S <= max_tile:
        return S
    t = (max_tile // 128) * 128
    while t >= 128:
        if S % t == 0:
            return t
        t -= 128
    return S  # fallback: single full-width block (still correct)


def conv1x1_add(x_nchw, weight, bias, other_nchw, *, max_spatial_tile=2048):
    """out = Conv2d_1x1(x) + other, all in f32.

    x_nchw:     (N, Cin, H, W)
    weight:     (Cout, Cin, 1, 1)
    bias:       (Cout,)
    other_nchw: (N, Cout, H, W)
    returns:    (N, Cout, H, W)
    """
    N, Cin, H, W = x_nchw.shape
    Cout = weight.shape[0]
    S = H * W

    # Metadata-only reshapes (no transpose): per-batch slabs are already
    # channel-major (C, H*W) contiguous, which is exactly what a 1x1 conv needs.
    x3 = x_nchw.reshape(N, Cin, S)
    other3 = other_nchw.reshape(N, Cout, S)
    w2d = weight.reshape(Cout, Cin)
    b2d = bias.reshape(Cout, 1)

    tile_s = _pick_spatial_tile(S, max_spatial_tile)
    n_s = S // tile_s

    out3 = pl.pallas_call(
        _conv1x1_bias_add_kernel,
        out_shape=jax.ShapeDtypeStruct((N, Cout, S), jnp.float32),
        grid=(N, n_s),
        in_specs=[
            # x: one batch slab, one spatial tile per grid step
            pl.BlockSpec((pl.Squeezed(), Cin, tile_s), lambda n, s: (n, 0, s)),
            # weight / bias: constant block index -> fetched once, kept resident
            pl.BlockSpec((Cout, Cin), lambda n, s: (0, 0)),
            pl.BlockSpec((Cout, 1), lambda n, s: (0, 0)),
            # other: matches the output tile
            pl.BlockSpec((pl.Squeezed(), Cout, tile_s), lambda n, s: (n, 0, s)),
        ],
        out_specs=pl.BlockSpec((pl.Squeezed(), Cout, tile_s), lambda n, s: (n, 0, s)),
        compiler_params=pltpu.CompilerParams(
            dimension_semantics=("parallel", "parallel"),
        ),
    )(x3, w2d, b2d, other3)

    # Free reshape back to NCHW (no transpose needed).
    return out3.reshape(N, Cout, H, W)


if __name__ == "__main__":
    key = jax.random.PRNGKey(0)
    k_x, k_w, k_b, k_o = jax.random.split(key, 4)

    # Shapes from the original PyTorch module spec.
    N, Cin, Cout, H, W = 1, 35, 52, 9, 9

    x1 = jax.random.normal(k_x, (N, Cin, H, W), dtype=jnp.float32)
    weight = jax.random.normal(k_w, (Cout, Cin, 1, 1), dtype=jnp.float32) * 0.1
    bias = jax.random.normal(k_b, (Cout,), dtype=jnp.float32) * 0.1
    other = jax.random.normal(k_o, (N, Cout, H, W), dtype=jnp.float32)

    out = conv1x1_add(x1, weight, bias, other)
    jax.block_until_ready(out)

    # Pure-JAX reference of the same math.
    ref = (
        jnp.einsum("oi,nihw->nohw", weight.reshape(Cout, Cin), x1)
        + bias.reshape(1, Cout, 1, 1)
        + other
    )
    assert out.shape == (N, Cout, H, W)
    assert jnp.allclose(out, ref, atol=1e-4, rtol=1e-4)

    print("KERNEL_OK")
</pallas_src>

<mosaic_0001>
module attributes {stable_mosaic.version = 11 : i64} {
  func.func @_conv1x1_bias_add_kernel(%arg0: i32, %arg1: i32, %arg2: memref<1x35x81xf32, #tpu.memory_space<vmem>>, %arg3: memref<52x35xf32, #tpu.memory_space<vmem>>, %arg4: memref<52x1xf32, #tpu.memory_space<vmem>>, %arg5: memref<1x52x81xf32, #tpu.memory_space<vmem>>, %arg6: memref<1x52x81xf32, #tpu.memory_space<vmem>>) attributes {dimension_semantics = [#tpu.dimension_semantics<parallel>, #tpu.dimension_semantics<parallel>], iteration_bounds = array<i64: 1, 1>, scalar_prefetch = 0 : i64, scratch_operands = 0 : i64, tpu.core_type = #tpu.core_type<tc>, window_params = [{transform_indices = @transform_0, window_bounds = array<i64: 1, 35, 81>}, {pipeline_mode = #tpu.pipeline_mode<synchronous>, transform_indices = @transform_1, window_bounds = array<i64: 52, 35>}, {pipeline_mode = #tpu.pipeline_mode<synchronous>, transform_indices = @transform_2, window_bounds = array<i64: 52, 1>}, {transform_indices = @transform_3, window_bounds = array<i64: 1, 52, 81>}, {transform_indices = @transform_4, window_bounds = array<i64: 1, 52, 81>}]} {
    %c0 = arith.constant 0 : index
    %c0_0 = arith.constant 0 : index
    %0 = vector.load %arg3[%c0, %c0_0] : memref<52x35xf32, #tpu.memory_space<vmem>>, vector<52x35xf32>
    %c0_1 = arith.constant 0 : index
    %c0_2 = arith.constant 0 : index
    %c0_3 = arith.constant 0 : index
    %1 = vector.load %arg2[%c0_1, %c0_2, %c0_3] : memref<1x35x81xf32, #tpu.memory_space<vmem>>, vector<1x35x81xf32>
    %2 = vector.shape_cast %1 : vector<1x35x81xf32> to vector<35x81xf32>
    %cst = arith.constant dense<0.000000e+00> : vector<52x81xf32>
    %3 = tpu.matmul %0, %2, %cst {dimension_numbers = #tpu.dot_dimension_numbers<[1], [0], [0], [1], [0, 0, 1, 1], [], []>} : vector<52x35xf32>, vector<35x81xf32>, vector<52x81xf32> -> vector<52x81xf32>
    %c0_4 = arith.constant 0 : index
    %c0_5 = arith.constant 0 : index
    %4 = vector.load %arg4[%c0_4, %c0_5] : memref<52x1xf32, #tpu.memory_space<vmem>>, vector<52x1xf32>
    %5 = vector.broadcast %4 : vector<52x1xf32> to vector<52x81xf32>
    %6 = arith.addf %3, %5 : vector<52x81xf32>
    %c0_6 = arith.constant 0 : index
    %c0_7 = arith.constant 0 : index
    %c0_8 = arith.constant 0 : index
    %7 = vector.load %arg5[%c0_6, %c0_7, %c0_8] : memref<1x52x81xf32, #tpu.memory_space<vmem>>, vector<1x52x81xf32>
    %8 = vector.shape_cast %7 : vector<1x52x81xf32> to vector<52x81xf32>
    %9 = arith.addf %6, %8 : vector<52x81xf32>
    %c0_9 = arith.constant 0 : index
    %c0_10 = arith.constant 0 : index
    %c0_11 = arith.constant 0 : index
    %10 = vector.load %arg6[%c0_9, %c0_10, %c0_11] : memref<1x52x81xf32, #tpu.memory_space<vmem>>, vector<1x52x81xf32>
    %11 = vector.shape_cast %10 : vector<1x52x81xf32> to vector<52x81xf32>
    %12 = vector.shape_cast %9 : vector<52x81xf32> to vector<1x52x81xf32>
    tpu.vector_store %arg6[%c0_9, %c0_10, %c0_11], %12 {strides = array<i32>} : memref<1x52x81xf32, #tpu.memory_space<vmem>>, vector<1x52x81xf32>,
    return
  }
  func.func @transform_0(%arg0: i32, %arg1: i32) -> (i32, i32, i32) {
    %c0_i32 = arith.constant 0 : i32
    %c0_i32_0 = arith.constant 0 : i32
    return %arg0, %c0_i32, %arg1 : i32, i32, i32
  }
  func.func @transform_1(%arg0: i32, %arg1: i32) -> (i32, i32) {
    %c0_i32 = arith.constant 0 : i32
    %c0_i32_0 = arith.constant 0 : i32
    %c0_i32_1 = arith.constant 0 : i32
    return %c0_i32, %c0_i32_0 : i32, i32
  }
  func.func @transform_2(%arg0: i32, %arg1: i32) -> (i32, i32) {
    %c0_i32 = arith.constant 0 : i32
    %c0_i32_0 = arith.constant 0 : i32
    %c0_i32_1 = arith.constant 0 : i32
    return %c0_i32, %c0_i32_0 : i32, i32
  }
  func.func @transform_3(%arg0: i32, %arg1: i32) -> (i32, i32, i32) {
    %c0_i32 = arith.constant 0 : i32
    %c0_i32_0 = arith.constant 0 : i32
    return %arg0, %c0_i32, %arg1 : i32, i32, i32
  }
  func.func @transform_4(%arg0: i32, %arg1: i32) -> (i32, i32, i32) {
    %c0_i32 = arith.constant 0 : i32
    %c0_i32_0 = arith.constant 0 : i32
    return %arg0, %c0_i32, %arg1 : i32, i32, i32
  }
}

</mosaic_0001>

<llo_original>
// kernel: tpu_custom_call.1
$region0: #{tpu_custom_call.1}
  #allocation0 [shape = 'u32[]', space=smem, size = 0x4, offset = 0x4, fixed_abs, tag = 'smem constant byte address 0x4 - core index']
  #allocation1 [shape = 'u32[144,128]{1,0:T(1,128)}', space=vmem, size = 0x12000, scoped, tag = 'internal scratch']
  %s0 = inlined_call_operand.vmem [shape: f32[1,35,81], index: 0, kind: input, shape index: {}]
  %s1 = inlined_call_operand.vmem [shape: f32[52,35], index: 1, kind: input, shape index: {}]
  %s2 = inlined_call_operand.vmem [shape: f32[52,1], index: 2, kind: input, shape index: {}]
  %s3 = inlined_call_operand.vmem [shape: f32[1,52,81], index: 3, kind: input, shape index: {}]
  %s4 = inlined_call_operand.vmem [shape: f32[1,52,81], index: 4, kind: output, shape index: {}]
  %s5 = sld [smem:[#allocation0]]
  $region26: #{tpu_custom_call.1} parent=0
    _
  %s7 = ssub.s32 1, %s5
  %s8 = scalar_select 0, %s7, %s5
  // Predicated region
  $region2: #{tpu_custom_call.1} parent=0 // pred_check
    _
  $region3: #{tpu_custom_call.1} parent=0 // pred_check_branch
    %10 = sbr.rel (0) target = $region5
  $region4: #{tpu_custom_call.1} parent=0 // pred_region
    _
  $region5: #{tpu_custom_call.1} parent=0 // pred_fallthru
    _
  // Predicated region
  $region6: #{tpu_custom_call.1} parent=0 // pred_check
    _
  $region7: #{tpu_custom_call.1} parent=0 // pred_check_branch
    %12 = sbr.rel (0) target = $region9
  $region8: #{tpu_custom_call.1} parent=0 // pred_region
    _
  $region9: #{tpu_custom_call.1} parent=0 // pred_fallthru
    _
  // Predicated region
  $region10: #{tpu_custom_call.1} parent=0 // pred_check
    _
  $region11: #{tpu_custom_call.1} parent=0 // pred_check_branch
    %14 = sbr.rel (0) target = $region13
  $region12: #{tpu_custom_call.1} parent=0 // pred_region
    _
  $region13: #{tpu_custom_call.1} parent=0 // pred_fallthru
    _
  // Predicated region
  $region14: #{tpu_custom_call.1} parent=0 // pred_check
    _
  $region15: #{tpu_custom_call.1} parent=0 // pred_check_branch
    %16 = sbr.rel (0) target = $region17
  $region16: #{tpu_custom_call.1} parent=0 // pred_region
    _
  $region17: #{tpu_custom_call.1} parent=0 // pred_fallthru
    _
  %v17 = vld [vmem:[%s1] sm:$0xff]
  %v18 = vld [vmem:[%s1 + $0x8] sm:$0xff]
  %v19 = vld [vmem:[%s1 + $0x10] sm:$0xff]
  %v20 = vld [vmem:[%s1 + $0x18] sm:$0xff]
  %v21 = vld [vmem:[%s1 + $0x20] sm:$0xff]
  %v22 = vld [vmem:[%s1 + $0x28] sm:$0xff]
  %v23 = vld [vmem:[%s1 + $0x30] sm:$0xf]
  %v24 = vld [vmem:[%s0] sm:$0xff]
  %v25 = vld [vmem:[%s0 + $0x8] sm:$0xff]
  %v26 = vld [vmem:[%s0 + $0x10] sm:$0xff]
  %v27 = vld [vmem:[%s0 + $0x18] sm:$0xff]
  %v28 = vld [vmem:[%s0 + $0x20] sm:$0x7]
  %v29 = vld [vmem:[%s2] sm:$0xff]
  %v30 = vld [vmem:[%s2 + $0x8] sm:$0xff]
  %v31 = vld [vmem:[%s2 + $0x10] sm:$0xff]
  %v32 = vld [vmem:[%s2 + $0x18] sm:$0xff]
  %v33 = vld [vmem:[%s2 + $0x20] sm:$0xff]
  %v34 = vld [vmem:[%s2 + $0x28] sm:$0xff]
  %v35 = vld [vmem:[%s2 + $0x30] sm:$0xf]
  %37 = vset.pattern.permute.xlu0 0
  %38 = vperm.xlu0 %37, %v29
  %v39 = vpop.permute.xlu0 %38
  %42 = vset.pattern.permute.xlu0 0
  %43 = vperm.xlu0 %42, %v30
  %v44 = vpop.permute.xlu0 %43
  %47 = vset.pattern.permute.xlu0 0
  %48 = vperm.xlu0 %47, %v31
  %v49 = vpop.permute.xlu0 %48
  %52 = vset.pattern.permute.xlu0 0
  %53 = vperm.xlu0 %52, %v32
  %v54 = vpop.permute.xlu0 %53
  %57 = vset.pattern.permute.xlu0 0
  %58 = vperm.xlu0 %57, %v33
  %v59 = vpop.permute.xlu0 %58
  %62 = vset.pattern.permute.xlu0 0
  %63 = vperm.xlu0 %62, %v34
  %v64 = vpop.permute.xlu0 %63
  %67 = vset.pattern.permute.xlu0 0
  %68 = vperm.xlu0 %67, %v35
  %v69 = vpop.permute.xlu0 %68
  %vm71 = vcmask 285696
  %v73 = vsel %vm71, %v17, 0
  %v76 = vsel %vm71, %v18, 0
  %v79 = vsel %vm71, %v19, 0
  %v82 = vsel %vm71, %v20, 0
  %v85 = vsel %vm71, %v21, 0
  %v88 = vsel %vm71, %v22, 0
  %v91 = vsel %vm71, %v23, 0
  %vm93 = vcmask 1042432
  %v95 = vsel %vm93, %v28, 0
  %97 = vmatprep.subr.mxu0 0.0
  %98 = vmatpush1.msra.mxu0 0.0
  %99 = vmatprep.subr.mxu0 0.0
  %100 = vmatpush1.msra.mxu0 0.0
  %101 = vmatprep.subr.mxu0 0.0
  %102 = vmatpush1.msra.mxu0 0.0
  %103 = vmatprep.subr.mxu0 0.0
  %104 = vmatpush1.msra.mxu0 0.0
  %105 = vmatprep.subr.mxu0 0.0
  %106 = vmatpush1.msra.mxu0 0.0
  %107 = vmatprep.subr.mxu0 0.0
  %108 = vmatpush1.msra.mxu0 0.0
  %109 = vmatprep.subr.mxu0 0.0
  %110 = vmatpush1.msra.mxu0 0.0
  %111 = vmatprep.subr.mxu0 0.0
  %112 = vmatpush1.msra.mxu0 0.0
  %113 = vmatprep.subr.mxu0 0.0
  %114 = vmatpush1.msra.mxu0 0.0
  %115 = vmatprep.subr.mxu0 0.0
  %116 = vmatpush1.msra.mxu0 0.0
  %117 = vmatprep.subr.mxu0 0.0
  %118 = vmatpush1.msra.mxu0 0.0
  %119 = vmatprep.subr.mxu0 0.0
  %120 = vmatpush1.msra.mxu0 %v95
  %121 = vmatprep.subr.mxu0 0.0
  %122 = vmatpush1.msra.mxu0 %v27
  %123 = vmatprep.subr.mxu0 0.0
  %124 = vmatpush1.msra.mxu0 %v26
  %125 = vmatprep.subr.mxu0 0.0
  %126 = vmatpush1.msra.mxu0 %v25
  %127 = vmatprep.subr.mxu0 0.0
  %128 = vmatpush1.msra.mxu0 %v24
  %129 = vmatprep.subr.mxu0 0.0
  %130 = vmatpush2.msra.mxu0 0.0
  %131 = vmatprep.subr.mxu0 0.0
  %132 = vmatpush2.msra.mxu0 0.0
  %133 = vmatprep.subr.mxu0 0.0
  %134 = vmatpush2.msra.mxu0 0.0
  %135 = vmatprep.subr.mxu0 0.0
  %136 = vmatpush2.msra.mxu0 0.0
  %137 = vmatprep.subr.mxu0 0.0
  %138 = vmatpush2.msra.mxu0 0.0
  %139 = vmatprep.subr.mxu0 0.0
  %140 = vmatpush2.msra.mxu0 0.0
  %141 = vmatprep.subr.mxu0 0.0
  %142 = vmatpush2.msra.mxu0 0.0
  %143 = vmatprep.subr.mxu0 0.0
  %144 = vmatpush2.msra.mxu0 0.0
  %145 = vmatprep.subr.mxu0 0.0
  %146 = vmatpush2.msra.mxu0 0.0
  %147 = vmatprep.subr.mxu0 0.0
  %148 = vmatpush2.msra.mxu0 0.0
  %149 = vmatprep.subr.mxu0 0.0
  %150 = vmatpush2.msra.mxu0 0.0
  %151 = vmatprep.subr.mxu0 0.0
  %152 = vmatpush2.msra.mxu0 0.0
  %153 = vmatprep.subr.mxu0 0.0
  %154 = vmatpush2.msra.mxu0 0.0
  %155 = vmatprep.subr.mxu0 0.0
  %156 = vmatpush2.msra.mxu0 0.0
  %157 = vmatprep.subr.mxu0 0.0
  %158 = vmatpush2.msra.mxu0 0.0
  %159 = vmatprep.subr.mxu0 0.0
  %160 = vmatpush2.msra.mxu0 0.0
  %161 = vmatprep.mubr.f32.mxu0 0.0
  %162 = vmatmul.mubr.f32.gmra.mxu0 %v73
  %v163 = vpop.f32.mrf.mxu0
  %v164 = vadd.f32 %v39, %v163
  %v165 = vpop.f32.mrf.mxu0
  %166 = vmatprep.mubr.f32.mxu0 0.0
  %167 = vmatmul.mubr.f32.gmra.mxu0 %v76
  %v168 = vpop.f32.mrf.mxu0
  %v169 = vadd.f32 %v44, %v168
  %v170 = vpop.f32.mrf.mxu0
  %171 = vmatprep.mubr.f32.mxu0 0.0
  %172 = vmatmul.mubr.f32.gmra.mxu0 %v79
  %v173 = vpop.f32.mrf.mxu0
  %v174 = vadd.f32 %v49, %v173
  %v175 = vpop.f32.mrf.mxu0
  %176 = vmatprep.mubr.f32.mxu0 0.0
  %177 = vmatmul.mubr.f32.gmra.mxu0 %v82
  %v178 = vpop.f32.mrf.mxu0
  %v179 = vadd.f32 %v54, %v178
  %v180 = vpop.f32.mrf.mxu0
  %181 = vmatprep.mubr.f32.mxu0 0.0
  %182 = vmatmul.mubr.f32.gmra.mxu0 %v85
  %v183 = vpop.f32.mrf.mxu0
  %v184 = vadd.f32 %v59, %v183
  %v185 = vpop.f32.mrf.mxu0
  %186 = vmatprep.mubr.f32.mxu0 0.0
  %187 = vmatmul.mubr.f32.gmra.mxu0 %v88
  %v188 = vpop.f32.mrf.mxu0
  %v189 = vadd.f32 %v64, %v188
  %v190 = vpop.f32.mrf.mxu0
  %191 = vmatprep.mubr.f32.mxu0 0.0
  %192 = vmatmul.mubr.f32.gmra.mxu0 %v91
  %v193 = vpop.f32.mrf.mxu0
  %v194 = vadd.f32 %v69, %v193
  %v195 = vpop.f32.mrf.mxu0
  %196 = vdwg.mxu0
  %v197 = vld [vmem:[%s3] sm:$0xff]
  %v198 = vld [vmem:[%s3 + $0x8] sm:$0xff]
  %v199 = vld [vmem:[%s3 + $0x10] sm:$0xff]
  %v200 = vld [vmem:[%s3 + $0x18] sm:$0xff]
  %v201 = vld [vmem:[%s3 + $0x20] sm:$0xff]
  %v202 = vld [vmem:[%s3 + $0x28] sm:$0xff]
  %v203 = vld [vmem:[%s3 + $0x30] sm:$0xf]
  %v204 = vadd.f32 %v164, %v197
  %v205 = vadd.f32 %v169, %v198
  %v206 = vadd.f32 %v174, %v199
  %v207 = vadd.f32 %v179, %v200
  %v208 = vadd.f32 %v184, %v201
  %v209 = vadd.f32 %v189, %v202
  %v210 = vadd.f32 %v194, %v203
  %vm211 = vcmask 662528
  %212 = vst.msk [vmem:[%s4] sm:$0xff] %vm211, %v204
  %213 = vst.msk [vmem:[%s4 + $0x8] sm:$0xff] %vm211, %v205
  %214 = vst.msk [vmem:[%s4 + $0x10] sm:$0xff] %vm211, %v206
  %215 = vst.msk [vmem:[%s4 + $0x18] sm:$0xff] %vm211, %v207
  %216 = vst.msk [vmem:[%s4 + $0x20] sm:$0xff] %vm211, %v208
  %217 = vst.msk [vmem:[%s4 + $0x28] sm:$0xff] %vm211, %v209
  %vm218 = vcmask 658432
  %219 = vst.msk [vmem:[%s4 + $0x30] sm:$0xf] %vm218, %v210
  // Predicated region
  $region18: #{tpu_custom_call.1} parent=0 // pred_check
    _
  $region19: #{tpu_custom_call.1} parent=0 // pred_check_branch
    %221 = sbr.rel (0) target = $region21
  $region20: #{tpu_custom_call.1} parent=0 // pred_region
    _
  $region21: #{tpu_custom_call.1} parent=0 // pred_fallthru
    _
  // Predicated region
  $region22: #{tpu_custom_call.1} parent=0 // pred_check
    _
  $region23: #{tpu_custom_call.1} parent=0 // pred_check_branch
    %223 = sbr.rel (0) target = $region25
  $region24: #{tpu_custom_call.1} parent=0 // pred_region
    _
  $region25: #{tpu_custom_call.1} parent=0 // pred_fallthru
    _

</llo_original>
